<compile_context>
chip_gen: v6e
topology: v6e:2x2x1
jax: 0.10.0
libtpu: 0.0.40
codegen_flags: <defaults>
</compile_context>

<pallas_src>
import functools

import jax
import jax.numpy as jnp
from jax import lax
from jax.experimental import pallas as pl
from jax.experimental.pallas import tpu as pltpu


_SQRT_HALF = 0.7071067811865476
_SQRT_2_OVER_PI = 0.7978845608028654


def _round_up(x, m):
    return ((x + m - 1) // m) * m


def _vmem_capacity_bytes():
    """Physical per-TensorCore VMEM; conservative 64 MiB (v7x) if the query fails."""
    try:
        return int(pltpu.get_tpu_info().vmem_capacity_bytes)
    except Exception:
        return 64 << 20


def _erf(x):
    # Abramowitz & Stegun 7.1.26 (|error| < 1.5e-7): exact-GELU semantics to well below
    # f32 matmul noise, built only from ops with guaranteed Mosaic lowerings
    # (exp -> EUP, mul/add/select -> VPU). lax.erf is no longer a public JAX API.
    a1, a2, a3, a4, a5 = (0.254829592, -0.284496736, 1.421413741,
                          -1.453152027, 1.061405429)
    p = 0.3275911
    sign = jnp.where(x >= 0.0, 1.0, -1.0)
    a = jnp.abs(x)
    t = 1.0 / (1.0 + p * a)
    poly = ((((a5 * t + a4) * t + a3) * t + a2) * t + a1) * t
    return sign * (1.0 - poly * jnp.exp(-a * a))


def _gelu(x, approximate):
    # Elementwise math kept in f32 for v5e portability (no bf16 VPU there).
    if approximate:
        # HF "gelu_new" (what the albert-xxlarge-v2 config selects); tanh -> EUP.
        return 0.5 * x * (1.0 + jnp.tanh(_SQRT_2_OVER_PI * (x + 0.044715 * x * x * x)))
    # torch.nn.functional.gelu default (erf form), matching LeanFFN's default activation.
    return 0.5 * x * (1.0 + _erf(x * _SQRT_HALF))


# --------------------------------------------------------------------------------------
# Kernel
# --------------------------------------------------------------------------------------
def _lean_ffn_kernel(x_ref, lnw_ref, lnb_ref, w1_ref, b1_ref, w2_ref, b2_ref,
                     o_ref, xln_ref, acc_ref, *, ln_eps, gated, inner, approx_gelu):
    j = pl.program_id(1)

    # ---- once per row tile: LayerNorm (f32 math) into the MXU-dtype scratch ----
    @pl.when(j == 0)
    def _ln():
        x = x_ref[...].astype(jnp.float32)                       # (tm, H)
        mean = jnp.mean(x, axis=-1, keepdims=True)
        centered = x - mean
        var = jnp.mean(centered * centered, axis=-1, keepdims=True)
        x_ln = (centered * lax.rsqrt(var + ln_eps)
                * lnw_ref[...].astype(jnp.float32)
                + lnb_ref[...].astype(jnp.float32))
        xln_ref[...] = x_ln.astype(xln_ref.dtype)                # bf16 MXU operand

    x_ln = xln_ref[...]                                          # (tm, H)

    # ---- dense_i2h on the current intermediate tile (one fused dot, even if gated) ----
    pre = jnp.dot(x_ln, w1_ref[...], preferred_element_type=jnp.float32)
    pre = pre + b1_ref[...].astype(jnp.float32)
    if gated:
        # Lane-aligned static split: block layout is [gate_tile | lin_tile].
        hid = _gelu(pre[:, :inner], approx_gelu) * pre[:, inner:]
    else:
        hid = _gelu(pre, approx_gelu)                            # (tm, ti)

    # ---- dense_h2o partial product; first step stores, later steps accumulate ----
    partial = jnp.dot(hid.astype(w2_ref.dtype), w2_ref[...],
                      preferred_element_type=jnp.float32)

    @pl.when(j == 0)
    def _store():
        acc_ref[...] = partial

    @pl.when(j != 0)
    def _accum():
        acc_ref[...] += partial

    # ---- last intermediate tile: output bias + residual, write the row tile ----
    @pl.when(j == pl.num_programs(1) - 1)
    def _finalize():
        out = (acc_ref[...] + b2_ref[...].astype(jnp.float32)
               + x_ref[...].astype(jnp.float32))
        o_ref[...] = out.astype(o_ref.dtype)


# --------------------------------------------------------------------------------------
# Tiling / VMEM budgeting helpers
# --------------------------------------------------------------------------------------
def _pick_inner_tile(intermediate, hidden, gated, w_itemsize):
    cap = _vmem_capacity_bytes()
    weight_budget = int(cap * 0.45)          # double-buffered W1/W2 tiles
    cols_per_ti = 3 if gated else 2          # (gate+lin) i2h cols + h2o rows per ti
    divisible = [c for c in (512, 256, 128)
                 if intermediate >= c and intermediate % c == 0]
    for cand in divisible:
        if 2 * cols_per_ti * hidden * cand * w_itemsize <= weight_budget:
            return cand
    if divisible:
        return divisible[-1]                 # smallest lane-aligned tile (128)
    # TODO(synk): intermediate sizes that are not 128-aligned fall back to a single
    # full-extent weight block; pad the intermediate dim at prep time if that matters.
    return intermediate


def _estimate_vmem_bytes(tm, ti, hidden, gated, x_itemsize, w_itemsize):
    w1_cols = 2 * ti if gated else ti
    per_step = (2 * tm * hidden * x_itemsize                      # x tile + out tile
                + (hidden * w1_cols + ti * hidden) * w_itemsize   # W1 + W2 tiles
                + (w1_cols + 3 * hidden) * 4)                     # b1 + b2 + ln w/b
    scratch = tm * hidden * (w_itemsize + 4)                      # x_ln + f32 acc
    return 2 * per_step + scratch                                 # double buffered


# --------------------------------------------------------------------------------------
# Parameter preparation (done once, outside the forward path)
# --------------------------------------------------------------------------------------
def prepare_lean_ffn_params(ln_weight, ln_bias, i2h_weight, i2h_bias,
                            h2o_weight, h2o_bias, *, gated=False,
                            mxu_dtype=jnp.bfloat16, inner_tile=None):
    """One-time parameter preparation (transpose / gated split / MXU-dtype casts).

    PyTorch Linear conventions: i2h_weight [ffn_out, hidden] (ffn_out = I, or 2I when
    gated), h2o_weight [hidden, intermediate].
    """
    hidden, intermediate = h2o_weight.shape
    ffn_out = i2h_weight.shape[0]
    assert ffn_out == (2 * intermediate if gated else intermediate)
    assert ln_weight.shape == (hidden,) and ln_bias.shape == (hidden,)
    mxu_dtype = jnp.dtype(mxu_dtype)

    ti = inner_tile if inner_tile is not None else _pick_inner_tile(
        intermediate, hidden, gated, mxu_dtype.itemsize)
    assert intermediate % ti == 0
    assert ti == intermediate or ti % 128 == 0, "inner tile must be lane-aligned"
    n_inner = intermediate // ti

    f32 = jnp.float32
    lnw = ln_weight.reshape(1, hidden).astype(f32)
    lnb = ln_bias.reshape(1, hidden).astype(f32)
    w2 = jnp.transpose(h2o_weight).astype(mxu_dtype)                      # [I, H]
    b2 = h2o_bias.reshape(1, hidden).astype(f32)

    if gated:
        w1g = jnp.transpose(i2h_weight[:intermediate]).astype(mxu_dtype)  # [H, I] gate
        w1l = jnp.transpose(i2h_weight[intermediate:]).astype(mxu_dtype)  # [H, I] lin
        # Interleave per inner tile so block j of the fused matrix is [gate_j | lin_j]
        # -> one MXU dot per grid step, sliced at a lane-aligned boundary in-kernel.
        w1 = jnp.concatenate(
            [w1g.reshape(hidden, n_inner, ti), w1l.reshape(hidden, n_inner, ti)],
            axis=2).reshape(hidden, 2 * intermediate)
        b1 = jnp.concatenate(
            [i2h_bias[:intermediate].reshape(n_inner, ti),
             i2h_bias[intermediate:].reshape(n_inner, ti)],
            axis=1).reshape(1, 2 * intermediate).astype(f32)
    else:
        w1 = jnp.transpose(i2h_weight).astype(mxu_dtype)                  # [H, I]
        b1 = i2h_bias.reshape(1, intermediate).astype(f32)

    return dict(lnw=lnw, lnb=lnb, w1=w1, b1=b1, w2=w2, b2=b2, gated=gated,
                inner_tile=int(ti), hidden=int(hidden),
                intermediate=int(intermediate), mxu_dtype=mxu_dtype)


# --------------------------------------------------------------------------------------
# Forward wrapper
# --------------------------------------------------------------------------------------
def lean_ffn_apply(x, params, *, ln_eps=1e-12, activation="gelu_new",
                   row_tile=None, weight_buffer_count=None):
    """Fused LeanFFN forward: LayerNorm -> i2h -> GELU[(gated)] -> h2o -> + residual."""
    hidden = params["hidden"]
    intermediate = params["intermediate"]
    ti = params["inner_tile"]
    gated = params["gated"]
    mxu_dtype = params["mxu_dtype"]
    assert x.shape[-1] == hidden
    assert activation in ("gelu", "gelu_new")

    orig_shape = x.shape
    x2d = x.reshape(-1, hidden)                                   # [T, H]
    T = x2d.shape[0]
    x_itemsize = x2d.dtype.itemsize
    w_itemsize = mxu_dtype.itemsize
    n_inner = intermediate // ti
    w1_cols = 2 * ti if gated else ti
    cap = _vmem_capacity_bytes()

    # ---- row tile: large enough to amortize weight re-streaming (one full weight read
    # per row tile), small enough to fit the VMEM budget, and split >= 2 ways so the
    # "parallel" axis can be sharded over both v7x TensorCores. ----
    if row_tile is None:
        row_tile = 512 if cap >= (96 << 20) else 256              # v5e/v6e : v7x
    tm = min(row_tile, _round_up(T, 8))
    while tm > 64 and _estimate_vmem_bytes(tm, ti, hidden, gated,
                                           x_itemsize, w_itemsize) > int(cap * 0.72):
        tm = _round_up(tm // 2, 8)
    if _round_up(T, tm) // tm < 2 and tm > 8:
        tm = _round_up((tm + 1) // 2, 8)
    T_pad = _round_up(T, tm)
    if T_pad != T:
        # Padded rows run through LayerNorm with var=0 (finite, sliced off below).
        x2d = jnp.pad(x2d, ((0, T_pad - T), (0, 0)))
    n_rows = T_pad // tm

    vmem_needed = _estimate_vmem_bytes(tm, ti, hidden, gated, x_itemsize, w_itemsize)
    vmem_limit = int(min(max(int(vmem_needed * 1.25), 32 << 20), int(cap * 0.75)))

    def _wspec(shape, index_map):
        if weight_buffer_count is None:
            return pl.BlockSpec(shape, index_map)
        # e.g. Buffered(3) on v5e/v6e to hide weight DMA latency; avoid on v7x (64 MiB).
        return pl.BlockSpec(shape, index_map,
                            pipeline_mode=pl.Buffered(weight_buffer_count))

    weight_bytes = (int(params["w1"].size + params["w2"].size) * w_itemsize
                    + int(params["b1"].size + params["b2"].size
                          + params["lnw"].size + params["lnb"].size) * 4)
    cost = pl.CostEstimate(
        flops=int(2 * T_pad * hidden * (w1_cols * n_inner + intermediate)),
        transcendentals=int(T_pad * intermediate),
        # Weights are re-streamed from HBM once per row tile.
        bytes_accessed=int(2 * T_pad * hidden * x_itemsize + n_rows * weight_bytes),
    )

    kernel = functools.partial(_lean_ffn_kernel, ln_eps=float(ln_eps), gated=gated,
                               inner=ti, approx_gelu=(activation == "gelu_new"))

    out2d = pl.pallas_call(
        kernel,
        out_shape=jax.ShapeDtypeStruct((T_pad, hidden), x.dtype),
        grid_spec=pltpu.PrefetchScalarGridSpec(
            num_scalar_prefetch=0,
            grid=(n_rows, n_inner),
            in_specs=[
                pl.BlockSpec((tm, hidden), lambda i, j: (i, 0)),   # x rows (resident over j)
                pl.BlockSpec((1, hidden), lambda i, j: (0, 0)),    # ln weight
                pl.BlockSpec((1, hidden), lambda i, j: (0, 0)),    # ln bias
                _wspec((hidden, w1_cols), lambda i, j: (0, j)),    # W1 tile (fused if gated)
                pl.BlockSpec((1, w1_cols), lambda i, j: (0, j)),   # b1 tile
                _wspec((ti, hidden), lambda i, j: (j, 0)),         # W2 tile
                pl.BlockSpec((1, hidden), lambda i, j: (0, 0)),    # b2
            ],
            out_specs=pl.BlockSpec((tm, hidden), lambda i, j: (i, 0)),
            scratch_shapes=[
                pltpu.VMEM((tm, hidden), mxu_dtype),      # LayerNorm result, reused over j
                pltpu.VMEM((tm, hidden), jnp.float32),    # f32 accumulator for dense_h2o
            ],
        ),
        compiler_params=pltpu.CompilerParams(
            dimension_semantics=("parallel", "arbitrary"),
            vmem_limit_bytes=vmem_limit,
        ),
        cost_estimate=cost,
    )(x2d, params["lnw"], params["lnb"], params["w1"], params["b1"],
      params["w2"], params["b2"])

    if T_pad != T:
        out2d = out2d[:T]
    return out2d.reshape(orig_shape)


def lean_ffn(x, ln_weight, ln_bias, i2h_weight, i2h_bias, h2o_weight, h2o_bias,
             *, ln_eps=1e-12, gated=False, activation="gelu_new",
             mxu_dtype=jnp.bfloat16, inner_tile=None, row_tile=None):
    # Convenience one-shot entry point; a serving path should call
    # prepare_lean_ffn_params() once at weight-load time instead.
    params = prepare_lean_ffn_params(ln_weight, ln_bias, i2h_weight, i2h_bias,
                                     h2o_weight, h2o_bias, gated=gated,
                                     mxu_dtype=mxu_dtype, inner_tile=inner_tile)
    return lean_ffn_apply(x, params, ln_eps=ln_eps, activation=activation,
                          row_tile=row_tile)


# --------------------------------------------------------------------------------------
# Reference + tests
# --------------------------------------------------------------------------------------
def _reference(x, ln_weight, ln_bias, i2h_weight, i2h_bias, h2o_weight, h2o_bias,
               *, ln_eps=1e-12, gated=False, activation="gelu_new",
               operand_dtype=jnp.float32):
    hidden = x.shape[-1]
    intermediate = h2o_weight.shape[1]
    approx = activation == "gelu_new"
    q = lambda a: a.astype(operand_dtype).astype(jnp.float32)
    x2d = x.reshape(-1, hidden).astype(jnp.float32)
    mean = jnp.mean(x2d, axis=-1, keepdims=True)
    var = jnp.mean((x2d - mean) ** 2, axis=-1, keepdims=True)
    x_ln = (x2d - mean) * lax.rsqrt(var + ln_eps) * ln_weight + ln_bias
    pre = q(x_ln) @ q(i2h_weight.T) + i2h_bias
    if gated:
        hid = _gelu(pre[:, :intermediate], approx) * pre[:, intermediate:]
    else:
        hid = _gelu(pre, approx)
    out = q(hid) @ q(h2o_weight.T) + h2o_bias + x2d
    return out.reshape(x.shape).astype(x.dtype)


def _run_case(batch, seq, hidden, intermediate, gated, seed, *,
              inner_tile=None, activation="gelu_new"):
    key = jax.random.PRNGKey(seed)
    keys = jax.random.split(key, 7)
    x = jax.random.normal(keys[0], (batch, seq, hidden), dtype=jnp.float32)
    ln_w = 1.0 + 0.01 * jax.random.normal(keys[1], (hidden,), dtype=jnp.float32)
    ln_b = 0.01 * jax.random.normal(keys[2], (hidden,), dtype=jnp.float32)
    ffn_out = 2 * intermediate if gated else intermediate
    i2h_w = (jax.random.normal(keys[3], (ffn_out, hidden), dtype=jnp.float32)
             / jnp.sqrt(jnp.float32(hidden)))
    i2h_b = 0.01 * jax.random.normal(keys[4], (ffn_out,), dtype=jnp.float32)
    h2o_w = (jax.random.normal(keys[5], (hidden, intermediate), dtype=jnp.float32)
             / jnp.sqrt(jnp.float32(intermediate)))
    h2o_b = 0.01 * jax.random.normal(keys[6], (hidden,), dtype=jnp.float32)

    params = prepare_lean_ffn_params(ln_w, ln_b, i2h_w, i2h_b, h2o_w, h2o_b,
                                     gated=gated, inner_tile=inner_tile)
    out = jax.block_until_ready(
        lean_ffn_apply(x, params, ln_eps=1e-12, activation=activation))
    assert out.shape == x.shape

    common = dict(ln_eps=1e-12, gated=gated, activation=activation)
    ref_matched = _reference(x, ln_w, ln_b, i2h_w, i2h_b, h2o_w, h2o_b,
                             operand_dtype=jnp.bfloat16, **common)
    ref_exact = _reference(x, ln_w, ln_b, i2h_w, i2h_b, h2o_w, h2o_b,
                           operand_dtype=jnp.float32, **common)

    err = float(jnp.max(jnp.abs(out - ref_matched)))
    assert jnp.allclose(out, ref_matched, atol=5e-3, rtol=5e-3), (
        f"precision-matched check failed (b={batch},s={seq},h={hidden},"
        f"i={intermediate},gated={gated}) max_err={err}")
    err_f32 = float(jnp.max(jnp.abs(out - ref_exact)))
    assert err_f32 < 8e-2, (
        f"f32-reference sanity check failed (b={batch},s={seq},h={hidden},"
        f"i={intermediate},gated={gated}) max_err={err_f32}")


if __name__ == "__main__":
    # Non-gated (LeanFFN default), intermediate tiled over 2 reduction steps.
    _run_case(2, 8, 32, 256, False, seed=0, inner_tile=128)
    # Gated variant, single full-extent intermediate tile, exact-erf GELU path.
    _run_case(2, 8, 32, 64, True, seed=1, activation="gelu")
    # Gated with per-tile interleaved fused W1 (2 reduction steps).
    _run_case(2, 8, 32, 256, True, seed=2, inner_tile=128)
    # Token count not divisible by the row tile -> exercises the padding path.
    _run_case(1, 13, 32, 64, False, seed=3)
    print("KERNEL_OK")
</pallas_src>

<mosaic_0001>
module attributes {stable_mosaic.version = 11 : i64} {
  func.func @_lean_ffn_kernel(%arg0: i32, %arg1: i32, %arg2: memref<8x32xf32, #tpu.memory_space<vmem>>, %arg3: memref<1x32xf32, #tpu.memory_space<vmem>>, %arg4: memref<1x32xf32, #tpu.memory_space<vmem>>, %arg5: memref<32x128xbf16, #tpu.memory_space<vmem>>, %arg6: memref<1x128xf32, #tpu.memory_space<vmem>>, %arg7: memref<128x32xbf16, #tpu.memory_space<vmem>>, %arg8: memref<1x32xf32, #tpu.memory_space<vmem>>, %arg9: memref<8x32xf32, #tpu.memory_space<vmem>>, %arg10: memref<8x32xbf16, #tpu.memory_space<vmem>>, %arg11: memref<8x32xf32, #tpu.memory_space<vmem>>) attributes {dimension_semantics = [#tpu.dimension_semantics<parallel>, #tpu.dimension_semantics<arbitrary>], iteration_bounds = array<i64: 2, 2>, scalar_prefetch = 0 : i64, scratch_operands = 2 : i64, tpu.core_type = #tpu.core_type<tc>, window_params = [{transform_indices = @transform_0, window_bounds = array<i64: 8, 32>}, {pipeline_mode = #tpu.pipeline_mode<synchronous>, transform_indices = @transform_1, window_bounds = array<i64: 1, 32>}, {pipeline_mode = #tpu.pipeline_mode<synchronous>, transform_indices = @transform_2, window_bounds = array<i64: 1, 32>}, {transform_indices = @transform_3, window_bounds = array<i64: 32, 128>}, {transform_indices = @transform_4, window_bounds = array<i64: 1, 128>}, {transform_indices = @transform_5, window_bounds = array<i64: 128, 32>}, {pipeline_mode = #tpu.pipeline_mode<synchronous>, transform_indices = @transform_6, window_bounds = array<i64: 1, 32>}, {transform_indices = @transform_7, window_bounds = array<i64: 8, 32>}]} {
    %c0_i32 = arith.constant 0 : i32
    %0 = arith.cmpi eq, %arg1, %c0_i32 : i32
    %1 = arith.extui %0 : i1 to i32
    %c0_i32_0 = arith.constant 0 : i32
    %2 = arith.cmpi ne, %1, %c0_i32_0 : i32
    scf.if %2 {
      %c0_18 = arith.constant 0 : index
      %c0_19 = arith.constant 0 : index
      %34 = vector.load %arg2[%c0_18, %c0_19] : memref<8x32xf32, #tpu.memory_space<vmem>>, vector<8x32xf32>
      %cst_20 = arith.constant dense<0.000000e+00> : vector<8xf32>
      %35 = vector.multi_reduction <add>, %34, %cst_20 [1] : vector<8x32xf32> to vector<8xf32>
      %36 = vector.shape_cast %35 : vector<8xf32> to vector<8x1xf32>
      %cst_21 = arith.constant 3.200000e+01 : f32
      %37 = vector.broadcast %cst_21 : f32 to vector<8x1xf32>
      %38 = arith.divf %36, %37 : vector<8x1xf32>
      %39 = vector.broadcast %38 : vector<8x1xf32> to vector<8x32xf32>
      %40 = arith.subf %34, %39 : vector<8x32xf32>
      %41 = arith.mulf %40, %40 : vector<8x32xf32>
      %cst_22 = arith.constant dense<0.000000e+00> : vector<8xf32>
      %42 = vector.multi_reduction <add>, %41, %cst_22 [1] : vector<8x32xf32> to vector<8xf32>
      %43 = vector.shape_cast %42 : vector<8xf32> to vector<8x1xf32>
      %cst_23 = arith.constant 3.200000e+01 : f32
      %44 = vector.broadcast %cst_23 : f32 to vector<8x1xf32>
      %45 = arith.divf %43, %44 : vector<8x1xf32>
      %cst_24 = arith.constant 9.99999996E-13 : f32
      %46 = vector.broadcast %cst_24 : f32 to vector<8x1xf32>
      %47 = arith.addf %45, %46 : vector<8x1xf32>
      %48 = math.rsqrt %47 : vector<8x1xf32>
      %49 = vector.broadcast %48 : vector<8x1xf32> to vector<8x32xf32>
      %50 = arith.mulf %40, %49 : vector<8x32xf32>
      %c0_25 = arith.constant 0 : index
      %c0_26 = arith.constant 0 : index
      %51 = vector.load %arg3[%c0_25, %c0_26] : memref<1x32xf32, #tpu.memory_space<vmem>>, vector<1x32xf32>
      %52 = vector.broadcast %51 : vector<1x32xf32> to vector<8x32xf32>
      %53 = arith.mulf %50, %52 : vector<8x32xf32>
      %c0_27 = arith.constant 0 : index
      %c0_28 = arith.constant 0 : index
      %54 = vector.load %arg4[%c0_27, %c0_28] : memref<1x32xf32, #tpu.memory_space<vmem>>, vector<1x32xf32>
      %55 = vector.broadcast %54 : vector<1x32xf32> to vector<8x32xf32>
      %56 = arith.addf %53, %55 : vector<8x32xf32>
      %57 = arith.truncf %56 : vector<8x32xf32> to vector<8x32xbf16>
      %c0_29 = arith.constant 0 : index
      %c0_30 = arith.constant 0 : index
      %58 = vector.load %arg10[%c0_29, %c0_30] : memref<8x32xbf16, #tpu.memory_space<vmem>>, vector<8x32xbf16>
      tpu.vector_store %arg10[%c0_29, %c0_30], %57 {strides = array<i32>} : memref<8x32xbf16, #tpu.memory_space<vmem>>, vector<8x32xbf16>,
    } else {
    }
    %c0 = arith.constant 0 : index
    %c0_1 = arith.constant 0 : index
    %3 = vector.load %arg10[%c0, %c0_1] : memref<8x32xbf16, #tpu.memory_space<vmem>>, vector<8x32xbf16>
    %c0_2 = arith.constant 0 : index
    %c0_3 = arith.constant 0 : index
    %4 = vector.load %arg5[%c0_2, %c0_3] : memref<32x128xbf16, #tpu.memory_space<vmem>>, vector<32x128xbf16>
    %cst = arith.constant dense<0.000000e+00> : vector<8x128xf32>
    %5 = tpu.matmul %3, %4, %cst {dimension_numbers = #tpu.dot_dimension_numbers<[1], [0], [0], [1], [0, 0, 1, 1], [], []>} : vector<8x32xbf16>, vector<32x128xbf16>, vector<8x128xf32> -> vector<8x128xf32>
    %c0_4 = arith.constant 0 : index
    %c0_5 = arith.constant 0 : index
    %6 = vector.load %arg6[%c0_4, %c0_5] : memref<1x128xf32, #tpu.memory_space<vmem>>, vector<1x128xf32>
    %7 = vector.broadcast %6 : vector<1x128xf32> to vector<8x128xf32>
    %8 = arith.addf %5, %7 : vector<8x128xf32>
    %cst_6 = arith.constant 5.000000e-01 : f32
    %9 = vector.broadcast %cst_6 : f32 to vector<8x128xf32>
    %10 = arith.mulf %9, %8 : vector<8x128xf32>
    %cst_7 = arith.constant 4.471500e-02 : f32
    %11 = vector.broadcast %cst_7 : f32 to vector<8x128xf32>
    %12 = arith.mulf %11, %8 : vector<8x128xf32>
    %13 = arith.mulf %12, %8 : vector<8x128xf32>
    %14 = arith.mulf %13, %8 : vector<8x128xf32>
    %15 = arith.addf %8, %14 : vector<8x128xf32>
    %cst_8 = arith.constant 0.797884583 : f32
    %16 = vector.broadcast %cst_8 : f32 to vector<8x128xf32>
    %17 = arith.mulf %16, %15 : vector<8x128xf32>
    %18 = math.tanh %17 : vector<8x128xf32>
    %cst_9 = arith.constant 1.000000e+00 : f32
    %19 = vector.broadcast %cst_9 : f32 to vector<8x128xf32>
    %20 = arith.addf %19, %18 : vector<8x128xf32>
    %21 = arith.mulf %10, %20 : vector<8x128xf32>
    %22 = arith.truncf %21 : vector<8x128xf32> to vector<8x128xbf16>
    %c0_10 = arith.constant 0 : index
    %c0_11 = arith.constant 0 : index
    %23 = vector.load %arg7[%c0_10, %c0_11] : memref<128x32xbf16, #tpu.memory_space<vmem>>, vector<128x32xbf16>
    %cst_12 = arith.constant dense<0.000000e+00> : vector<8x32xf32>
    %24 = tpu.matmul %22, %23, %cst_12 {dimension_numbers = #tpu.dot_dimension_numbers<[1], [0], [0], [1], [0, 0, 1, 1], [], []>} : vector<8x128xbf16>, vector<128x32xbf16>, vector<8x32xf32> -> vector<8x32xf32>
    %c0_i32_13 = arith.constant 0 : i32
    %25 = arith.cmpi eq, %arg1, %c0_i32_13 : i32
    %26 = arith.extui %25 : i1 to i32
    %c0_i32_14 = arith.constant 0 : i32
    %27 = arith.cmpi ne, %26, %c0_i32_14 : i32
    scf.if %27 {
      %c0_18 = arith.constant 0 : index
      %c0_19 = arith.constant 0 : index
      %34 = vector.load %arg11[%c0_18, %c0_19] : memref<8x32xf32, #tpu.memory_space<vmem>>, vector<8x32xf32>
      tpu.vector_store %arg11[%c0_18, %c0_19], %24 {strides = array<i32>} : memref<8x32xf32, #tpu.memory_space<vmem>>, vector<8x32xf32>,
    } else {
    }
    %c0_i32_15 = arith.constant 0 : i32
    %28 = arith.cmpi ne, %arg1, %c0_i32_15 : i32
    %29 = arith.extui %28 : i1 to i32
    %c0_i32_16 = arith.constant 0 : i32
    %30 = arith.cmpi ne, %29, %c0_i32_16 : i32
    scf.if %30 {
      %c0_18 = arith.constant 0 : index
      %c0_19 = arith.constant 0 : index
      %34 = vector.load %arg11[%c0_18, %c0_19] : memref<8x32xf32, #tpu.memory_space<vmem>>, vector<8x32xf32>
      %35 = arith.addf %34, %24 : vector<8x32xf32>
      %c0_20 = arith.constant 0 : index
      %c0_21 = arith.constant 0 : index
      %36 = vector.load %arg11[%c0_20, %c0_21] : memref<8x32xf32, #tpu.memory_space<vmem>>, vector<8x32xf32>
      tpu.vector_store %arg11[%c0_20, %c0_21], %35 {strides = array<i32>} : memref<8x32xf32, #tpu.memory_space<vmem>>, vector<8x32xf32>,
    } else {
    }
    %c1_i32 = arith.constant 1 : i32
    %31 = arith.cmpi eq, %arg1, %c1_i32 : i32
    %32 = arith.extui %31 : i1 to i32
    %c0_i32_17 = arith.constant 0 : i32
    %33 = arith.cmpi ne, %32, %c0_i32_17 : i32
    scf.if %33 {
      %c0_18 = arith.constant 0 : index
      %c0_19 = arith.constant 0 : index
      %34 = vector.load %arg11[%c0_18, %c0_19] : memref<8x32xf32, #tpu.memory_space<vmem>>, vector<8x32xf32>
      %c0_20 = arith.constant 0 : index
      %c0_21 = arith.constant 0 : index
      %35 = vector.load %arg8[%c0_20, %c0_21] : memref<1x32xf32, #tpu.memory_space<vmem>>, vector<1x32xf32>
      %36 = vector.broadcast %35 : vector<1x32xf32> to vector<8x32xf32>
      %37 = arith.addf %34, %36 : vector<8x32xf32>
      %c0_22 = arith.constant 0 : index
      %c0_23 = arith.constant 0 : index
      %38 = vector.load %arg2[%c0_22, %c0_23] : memref<8x32xf32, #tpu.memory_space<vmem>>, vector<8x32xf32>
      %39 = arith.addf %37, %38 : vector<8x32xf32>
      %c0_24 = arith.constant 0 : index
      %c0_25 = arith.constant 0 : index
      %40 = vector.load %arg9[%c0_24, %c0_25] : memref<8x32xf32, #tpu.memory_space<vmem>>, vector<8x32xf32>
      tpu.vector_store %arg9[%c0_24, %c0_25], %39 {strides = array<i32>} : memref<8x32xf32, #tpu.memory_space<vmem>>, vector<8x32xf32>,
    } else {
    }
    return
  }
  func.func @transform_0(%arg0: i32, %arg1: i32) -> (i32, i32) {
    %c0_i32 = arith.constant 0 : i32
    %c0_i32_0 = arith.constant 0 : i32
    return %arg0, %c0_i32 : i32, i32
  }
  func.func @transform_1(%arg0: i32, %arg1: i32) -> (i32, i32) {
    %c0_i32 = arith.constant 0 : i32
    %c0_i32_0 = arith.constant 0 : i32
    %c0_i32_1 = arith.constant 0 : i32
    return %c0_i32, %c0_i32_0 : i32, i32
  }
  func.func @transform_2(%arg0: i32, %arg1: i32) -> (i32, i32) {
    %c0_i32 = arith.constant 0 : i32
    %c0_i32_0 = arith.constant 0 : i32
    %c0_i32_1 = arith.constant 0 : i32
    return %c0_i32, %c0_i32_0 : i32, i32
  }
  func.func @transform_3(%arg0: i32, %arg1: i32) -> (i32, i32) {
    %c0_i32 = arith.constant 0 : i32
    %c0_i32_0 = arith.constant 0 : i32
    return %c0_i32, %arg1 : i32, i32
  }
  func.func @transform_4(%arg0: i32, %arg1: i32) -> (i32, i32) {
    %c0_i32 = arith.constant 0 : i32
    %c0_i32_0 = arith.constant 0 : i32
    return %c0_i32, %arg1 : i32, i32
  }
  func.func @transform_5(%arg0: i32, %arg1: i32) -> (i32, i32) {
    %c0_i32 = arith.constant 0 : i32
    %c0_i32_0 = arith.constant 0 : i32
    return %arg1, %c0_i32 : i32, i32
  }
  func.func @transform_6(%arg0: i32, %arg1: i32) -> (i32, i32) {
    %c0_i32 = arith.constant 0 : i32
    %c0_i32_0 = arith.constant 0 : i32
    %c0_i32_1 = arith.constant 0 : i32
    return %c0_i32, %c0_i32_0 : i32, i32
  }
  func.func @transform_7(%arg0: i32, %arg1: i32) -> (i32, i32) {
    %c0_i32 = arith.constant 0 : i32
    %c0_i32_0 = arith.constant 0 : i32
    return %arg0, %c0_i32 : i32, i32
  }
}

</mosaic_0001>

<llo_original>
// kernel: tpu_custom_call.1
$region0: #{tpu_custom_call.1}
  #allocation0 [shape = 'u32[]', space=smem, size = 0x4, offset = 0x4, fixed_abs, tag = 'smem constant byte address 0x4 - core index']
  #allocation1 [shape = 'u32[144,128]{1,0:T(1,128)}', space=vmem, size = 0x12000, scoped, tag = 'internal scratch']
  #allocation2 [shape = 'bf16[8,32]{1,0:T(8,128)(2,1)}', space=vmem, size = 0x800, scoped, tag = 'scratch operand']
  #allocation3 [shape = 'f32[8,32]{1,0:T(8,128)}', space=vmem, size = 0x1000, scoped, tag = 'scratch operand']
  %s0 = inlined_call_operand.vmem [shape: f32[16,32], index: 0, kind: input, shape index: {}]
  %s1 = inlined_call_operand.vmem [shape: f32[1,32], index: 1, kind: input, shape index: {}]
  %s2 = inlined_call_operand.vmem [shape: f32[1,32], index: 2, kind: input, shape index: {}]
  %s3 = inlined_call_operand.vmem [shape: bf16[32,256], index: 3, kind: input, shape index: {}]
  %s4 = inlined_call_operand.vmem [shape: f32[1,256], index: 4, kind: input, shape index: {}]
  %s5 = inlined_call_operand.vmem [shape: bf16[256,32], index: 5, kind: input, shape index: {}]
  %s6 = inlined_call_operand.vmem [shape: f32[1,32], index: 6, kind: input, shape index: {}]
  %s7 = inlined_call_operand.hbm [shape: f32[16,32], index: 7, kind: output, shape index: {}]
  %s8 = sld [smem:[#allocation0]]
  $region118: #{tpu_custom_call.1} parent=0
    _
  %s10 = ssub.s32 1, %s8
  %s11 = scalar_select 0, %s10, %s8
  $region1: #{tpu_custom_call.1} parent=0
    #allocation4 [shape = 'u8[16384]{0}', space=vmem, size = 0x4000, scoped, tag = 'input window, operand 3']
    #allocation5 [shape = 'u8[8192]{0}', space=vmem, size = 0x2000, scoped, tag = 'output window, operand 0']
    #allocation6 [shape = 's32[2]{0}', space=sflag, size = 0x8, scoped, tag = 'scoped memory for tpu_custom_call.1']
    %12 = vsyncpa [#allocation6], 0
    %s13 = scalar_lea.sflag [#allocation6], 1
    %14 = vsyncpa %s13, 0
    loop: start=0, step=1, limit=6
    $region2: #{tpu_custom_call.1} parent=1 // loop_pre_header
      _
    $region3: #{tpu_custom_call.1} parent=1 // loop_header
      %s16 = sphi 0, %s20
      %p17 = scmp.ge.s32.totalorder %s16, 6
      %s23 = sphi 0, %s35
      %s24 = sphi 0, %s31
      %s25 = sphi 0, %s23
      %s26 = sphi 0, %s24
      %s27 = sphi 0, %s25
      %s28 = sphi 0, %s26
      %s38 = sphi 0, %s40
      %s41 = sphi 0, %s38
      %s42 = sphi 0, %s41
      %s58 = sphi 0, %s42
      %s62 = sphi 0, %s62
      %s64 = sphi 0, %s62
      %s65 = sphi 0, %s64
      %s79 = sphi 0, %s65
      %s83 = sphi 0, %s83
      %s85 = sphi 0, %s83
      %s86 = sphi 0, %s85
      %s100 = sphi 0, %s86
      %s106 = sphi 0, %s108
      %s109 = sphi 0, %s106
      %s110 = sphi 0, %s109
      %s126 = sphi 0, %s110
      %s132 = sphi 0, %s134
      %s135 = sphi 0, %s132
      %s136 = sphi 0, %s135
      %s152 = sphi 0, %s136
      %s158 = sphi 0, %s160
      %s161 = sphi 0, %s158
      %s162 = sphi 0, %s161
      %s178 = sphi 0, %s162
      %s182 = sphi 0, %s182
      %s184 = sphi 0, %s182
      %s185 = sphi 0, %s184
      %s199 = sphi 0, %s185
      %s205 = sphi 0, %s207
      %s208 = sphi 0, %s205
      %s209 = sphi 0, %s208
      %s225 = sphi 0, %s209
    $region4: #{tpu_custom_call.1} parent=1 // loop_header_branch
      %19 = sbr.rel (%p17) target = $region8
    $region5: #{tpu_custom_call.1} parent=1 // loop_body
      %s21 = ssub.s32 %s16, 1
      %s22 = ssub.s32 %s16, 2
      %s29 = sadd.s32 1, %s24
      %p30 = scmp.ge.s32.totalorder %s29, 2
      %s31 = scalar_select %p30, 0, %s29
      %s32 = sadd.s32 1, %s23
      %s33 = scalar_select %p30, %s32, %s23
      %p34 = scmp.ge.s32.totalorder %s33, 2
      %s35 = scalar_select %p34, 0, %s33
      %s36 = ssub.s32 %s23, %s35
      %p37 = scmp.eq.s32.totalorder %s36, 0
      %s39 = sadd.s32 %s38, 1
      %s40 = scalar_select %p37, %s38, %s39
      %p43 = pneg %p37
      %p44 = scmp.eq.s32.totalorder %s16, 3
      %p45 = por %p43, %p44
      %p46 = scmp.ne.s32.totalorder %s38, %s41
      %p47 = scmp.eq.s32.totalorder %s16, 0
      %p48 = por %p46, %p47
      %p49 = scmp.ne.s32.totalorder %s38, %s41
      %p50 = scmp.eq.s32.totalorder %s21, 3
      %p51 = por %p49, %p50
      %p52 = scmp.ne.s32.totalorder %s41, %s42
      %p53 = scmp.eq.s32.totalorder %s21, 0
      %p54 = por %p52, %p53
      %p55 = scmp.ne.s32.totalorder %s41, %s42
      %p56 = scmp.eq.s32.totalorder %s22, 3
      %p57 = por %p55, %p56
      %p59 = scmp.ne.s32.totalorder %s42, %s58
      %p60 = scmp.eq.s32.totalorder %s22, 0
      %p61 = por %p59, %p60
      %s63 = sadd.s32 %s62, 1
      %p66 = scmp.eq.s32.totalorder %s16, 3
      %p67 = scmp.ne.s32.totalorder %s62, %s64
      %p68 = scmp.eq.s32.totalorder %s16, 0
      %p69 = por %p67, %p68
      %p70 = scmp.ne.s32.totalorder %s62, %s64
      %p71 = scmp.eq.s32.totalorder %s21, 3
      %p72 = por %p70, %p71
      %p73 = scmp.ne.s32.totalorder %s64, %s65
      %p74 = scmp.eq.s32.totalorder %s21, 0
      %p75 = por %p73, %p74
      %p76 = scmp.ne.s32.totalorder %s64, %s65
      %p77 = scmp.eq.s32.totalorder %s22, 3
      %p78 = por %p76, %p77
      %p80 = scmp.ne.s32.totalorder %s65, %s79
      %p81 = scmp.eq.s32.totalorder %s22, 0
      %p82 = por %p80, %p81
      %s84 = sadd.s32 %s83, 1
      %p87 = scmp.eq.s32.totalorder %s16, 3
      %p88 = scmp.ne.s32.totalorder %s83, %s85
      %p89 = scmp.eq.s32.totalorder %s16, 0
      %p90 = por %p88, %p89
      %p91 = scmp.ne.s32.totalorder %s83, %s85
      %p92 = scmp.eq.s32.totalorder %s21, 3
      %p93 = por %p91, %p92
      %p94 = scmp.ne.s32.totalorder %s85, %s86
      %p95 = scmp.eq.s32.totalorder %s21, 0
      %p96 = por %p94, %p95
      %p97 = scmp.ne.s32.totalorder %s85, %s86
      %p98 = scmp.eq.s32.totalorder %s22, 3
      %p99 = por %p97, %p98
      %p101 = scmp.ne.s32.totalorder %s86, %s100
      %p102 = scmp.eq.s32.totalorder %s22, 0
      %p103 = por %p101, %p102
      %s104 = ssub.s32 %s24, %s31
      %p105 = scmp.eq.s32.totalorder %s104, 0
      %s107 = sadd.s32 %s106, 1
      %s108 = scalar_select %p105, %s106, %s107
      %p111 = pneg %p105
      %p112 = scmp.eq.s32.totalorder %s16, 3
      %p113 = por %p111, %p112
      %p114 = scmp.ne.s32.totalorder %s106, %s109
      %p115 = scmp.eq.s32.totalorder %s16, 0
      %p116 = por %p114, %p115
      %p117 = scmp.ne.s32.totalorder %s106, %s109
      %p118 = scmp.eq.s32.totalorder %s21, 3
      %p119 = por %p117, %p118
      %p120 = scmp.ne.s32.totalorder %s109, %s110
      %p121 = scmp.eq.s32.totalorder %s21, 0
      %p122 = por %p120, %p121
      %p123 = scmp.ne.s32.totalorder %s109, %s110
      %p124 = scmp.eq.s32.totalorder %s22, 3
      %p125 = por %p123, %p124
      %p127 = scmp.ne.s32.totalorder %s110, %s126
      %p128 = scmp.eq.s32.totalorder %s22, 0
      %p129 = por %p127, %p128
      %s130 = ssub.s32 %s24, %s31
      %p131 = scmp.eq.s32.totalorder %s130, 0
      %s133 = sadd.s32 %s132, 1
      %s134 = scalar_select %p131, %s132, %s133
      %p137 = pneg %p131
      %p138 = scmp.eq.s32.totalorder %s16, 3
      %p139 = por %p137, %p138
      %p140 = scmp.ne.s32.totalorder %s132, %s135
      %p141 = scmp.eq.s32.totalorder %s16, 0
      %p142 = por %p140, %p141
      %p143 = scmp.ne.s32.totalorder %s132, %s135
      %p144 = scmp.eq.s32.totalorder %s21, 3
      %p145 = por %p143, %p144
      %p146 = scmp.ne.s32.totalorder %s135, %s136
      %p147 = scmp.eq.s32.totalorder %s21, 0
      %p148 = por %p146, %p147
      %p149 = scmp.ne.s32.totalorder %s135, %s136
      %p150 = scmp.eq.s32.totalorder %s22, 3
      %p151 = por %p149, %p150
      %p153 = scmp.ne.s32.totalorder %s136, %s152
      %p154 = scmp.eq.s32.totalorder %s22, 0
      %p155 = por %p153, %p154
      %s156 = ssub.s32 %s24, %s31
      %p157 = scmp.eq.s32.totalorder %s156, 0
      %s159 = sadd.s32 %s158, 1
      %s160 = scalar_select %p157, %s158, %s159
      %p163 = pneg %p157
      %p164 = scmp.eq.s32.totalorder %s16, 3
      %p165 = por %p163, %p164
      %p166 = scmp.ne.s32.totalorder %s158, %s161
      %p167 = scmp.eq.s32.totalorder %s16, 0
      %p168 = por %p166, %p167
      %p169 = scmp.ne.s32.totalorder %s158, %s161
      %p170 = scmp.eq.s32.totalorder %s21, 3
      %p171 = por %p169, %p170
      %p172 = scmp.ne.s32.totalorder %s161, %s162
      %p173 = scmp.eq.s32.totalorder %s21, 0
      %p174 = por %p172, %p173
      %p175 = scmp.ne.s32.totalorder %s161, %s162
      %p176 = scmp.eq.s32.totalorder %s22, 3
      %p177 = por %p175, %p176
      %p179 = scmp.ne.s32.totalorder %s162, %s178
      %p180 = scmp.eq.s32.totalorder %s22, 0
      %p181 = por %p179, %p180
      %s183 = sadd.s32 %s182, 1
      %p186 = scmp.eq.s32.totalorder %s16, 3
      %p187 = scmp.ne.s32.totalorder %s182, %s184
      %p188 = scmp.eq.s32.totalorder %s16, 0
      %p189 = por %p187, %p188
      %p190 = scmp.ne.s32.totalorder %s182, %s184
      %p191 = scmp.eq.s32.totalorder %s21, 3
      %p192 = por %p190, %p191
      %p193 = scmp.ne.s32.totalorder %s184, %s185
      %p194 = scmp.eq.s32.totalorder %s21, 0
      %p195 = por %p193, %p194
      %p196 = scmp.ne.s32.totalorder %s184, %s185
      %p197 = scmp.eq.s32.totalorder %s22, 3
      %p198 = por %p196, %p197
      %p200 = scmp.ne.s32.totalorder %s185, %s199
      %p201 = scmp.eq.s32.totalorder %s22, 0
      %p202 = por %p200, %p201
      %s203 = ssub.s32 %s23, %s35
      %p204 = scmp.eq.s32.totalorder %s203, 0
      %s206 = sadd.s32 %s205, 1
      %s207 = scalar_select %p204, %s205, %s206
      %p210 = pneg %p204
      %p211 = scmp.eq.s32.totalorder %s16, 3
      %p212 = por %p210, %p211
      %p213 = scmp.ne.s32.totalorder %s205, %s208
      %p214 = scmp.eq.s32.totalorder %s16, 0
      %p215 = por %p213, %p214
      %p216 = scmp.ne.s32.totalorder %s205, %s208
      %p217 = scmp.eq.s32.totalorder %s21, 3
      %p218 = por %p216, %p217
      %p219 = scmp.ne.s32.totalorder %s208, %s209
      %p220 = scmp.eq.s32.totalorder %s21, 0
      %p221 = por %p219, %p220
      %p222 = scmp.ne.s32.totalorder %s208, %s209
      %p223 = scmp.eq.s32.totalorder %s22, 3
      %p224 = por %p222, %p223
      %p226 = scmp.ne.s32.totalorder %s209, %s225
      %p227 = scmp.eq.s32.totalorder %s22, 0
      %p228 = por %p226, %p227
      %p229 = scmp.le.s32.totalorder 1, %s16
      %p230 = scmp.lt.s32.totalorder %s16, 5
      %p231 = pnand %p229, %p230
      %p232 = pneg %p231
      // Predicated region
      $region9: #{tpu_custom_call.1} parent=5 // pred_check
        _
      $region10: #{tpu_custom_call.1} parent=5 // pred_check_branch
        %234 = sbr.rel (%p231) target = $region12
      $region11: #{tpu_custom_call.1} parent=5 // pred_region
        %s235 = ssub.s32 %s16, 1
        // Predicated region
        $region13: #{tpu_custom_call.1} parent=11 // pred_check
          %p236 = pneg %p75
        $region14: #{tpu_custom_call.1} parent=11 // pred_check_branch
          %238 = sbr.rel (%p236) target = $region16
        $region15: #{tpu_custom_call.1} parent=11 // pred_region
          _
        $region16: #{tpu_custom_call.1} parent=11 // pred_fallthru
          _
        // Predicated region
        $region17: #{tpu_custom_call.1} parent=11 // pred_check
          %p239 = pneg %p96
        $region18: #{tpu_custom_call.1} parent=11 // pred_check_branch
          %241 = sbr.rel (%p239) target = $region20
        $region19: #{tpu_custom_call.1} parent=11 // pred_region
          _
        $region20: #{tpu_custom_call.1} parent=11 // pred_fallthru
          _
        // Predicated region
        $region21: #{tpu_custom_call.1} parent=11 // pred_check
          %p242 = pneg %p195
        $region22: #{tpu_custom_call.1} parent=11 // pred_check_branch
          %244 = sbr.rel (%p242) target = $region24
        $region23: #{tpu_custom_call.1} parent=11 // pred_region
          _
        $region24: #{tpu_custom_call.1} parent=11 // pred_fallthru
          _
      $region12: #{tpu_custom_call.1} parent=5 // pred_fallthru
        _
      %p245 = scmp.lt.s32.totalorder %s16, 4
      // Predicated region
      $region25: #{tpu_custom_call.1} parent=5 // pred_check
        %p246 = pneg %p245
      $region26: #{tpu_custom_call.1} parent=5 // pred_check_branch
        %248 = sbr.rel (%p246) target = $region28
      $region27: #{tpu_custom_call.1} parent=5 // pred_region
        // Predicated region
        $region29: #{tpu_custom_call.1} parent=27 // pred_check
          %p249 = pneg %p48
        $region30: #{tpu_custom_call.1} parent=27 // pred_check_branch
          %251 = sbr.rel (%p249) target = $region32
        $region31: #{tpu_custom_call.1} parent=27 // pred_region
          %p252 = scmp.lt.s32.totalorder %s23, 1
          %s253 = scalar_select %p252, %s23, 1
          %s254 = smul.addr %s253, 8
          %s255 = scalar_lea.vmem %s0, %s254
        $region32: #{tpu_custom_call.1} parent=27 // pred_fallthru
          _
        // Predicated region
        $region33: #{tpu_custom_call.1} parent=27 // pred_check
          %p256 = pneg %p116
        $region34: #{tpu_custom_call.1} parent=27 // pred_check_branch
          %258 = sbr.rel (%p256) target = $region36
        $region35: #{tpu_custom_call.1} parent=27 // pred_region
          %s259 = sand.u32 %s106, 1
          %s260 = sand.u32 %s106, 1
          %s261 = smul.addr %s260, 16
          %s262 = scalar_lea.vmem [#allocation4], %s261
          %s263 = smul.addr %s24, 4
          %s264 = scalar_lea.vmem %s3, %s263
          // Predicated region
          $region37: #{tpu_custom_call.1} parent=35 // pred_check
            _
          $region38: #{tpu_custom_call.1} parent=35 // pred_check_branch
            %266 = sbr.rel (0) target = $region40
          $region39: #{tpu_custom_call.1} parent=35 // pred_region
            // Predicated region
            $region41: #{tpu_custom_call.1} parent=39 // pred_check
              _
            $region42: #{tpu_custom_call.1} parent=39 // pred_check_branch
              %268 = sbr.rel target = $region44
            $region43: #{tpu_custom_call.1} parent=39 // pred_region
              // Predicated region
              $region56: #{tpu_custom_call.1} parent=43 // pred_check
                _
              $region57: #{tpu_custom_call.1} parent=43 // pred_check_branch
                %290 = sbr.rel (0) target = $region59
              $region58: #{tpu_custom_call.1} parent=43 // pred_region
                loop: start=0, step=1, limit=1
                $region60: #{tpu_custom_call.1} parent=58 // loop_pre_header
                  _
                $region61: #{tpu_custom_call.1} parent=58 // loop_header
                  %s292 = sphi 0, %s296
                  %p293 = scmp.ge.s32.totalorder %s292, 1
                  %s297 = sphi %s264, %s264
                  %s298 = sphi %s262, %s262
                $region62: #{tpu_custom_call.1} parent=58 // loop_header_branch
                  %295 = sbr.rel (%p293) target = $region66
                $region63: #{tpu_custom_call.1} parent=58 // loop_body
                  _
                $region64: #{tpu_custom_call.1} parent=58 // loop_footer
                  %s296 = sadd.s32 1, %s292
                $region65: #{tpu_custom_call.1} parent=58 // loop_footer_branch
                  %291 = sbr.rel target = $region61
                $region66: #{tpu_custom_call.1} parent=58 // loop_exit
                  _
                %s300 = ssub.s32 16, 1
                loop: start=0, step=1, limit=1
                $region67: #{tpu_custom_call.1} parent=58 // loop_pre_header
                  _
                $region68: #{tpu_custom_call.1} parent=58 // loop_header
                  %s302 = sphi 0, %s306
                  %p303 = scmp.ge.s32.totalorder %s302, 1
                  %s307 = sphi %s264, %s264
                  %s308 = sphi %s262, %s262
                $region69: #{tpu_custom_call.1} parent=58 // loop_header_branch
                  %305 = sbr.rel (%p303) target = $region73
                $region70: #{tpu_custom_call.1} parent=58 // loop_body
                  %v309 = vld [vmem:[%s307] sm:%s300]
                  %310 = vst [vmem:[%s308] sm:%s300] %v309
                  %v311 = vld [vmem:[%s307 + $0x8] sm:%s300]
                  %312 = vst [vmem:[%s308 + $0x4] sm:%s300] %v311
                  %v313 = vld [vmem:[%s307 + $0x10] sm:%s300]
                  %314 = vst [vmem:[%s308 + $0x8] sm:%s300] %v313
                  %v315 = vld [vmem:[%s307 + $0x18] sm:%s300]
                  %316 = vst [vmem:[%s308 + $0xc] sm:%s300] %v315
                $region71: #{tpu_custom_call.1} parent=58 // loop_footer
                  %s306 = sadd.s32 1, %s302
                $region72: #{tpu_custom_call.1} parent=58 // loop_footer_branch
                  %301 = sbr.rel target = $region68
                $region73: #{tpu_custom_call.1} parent=58 // loop_exit
                  _
              $region59: #{tpu_custom_call.1} parent=43 // pred_fallthru
                _
            $region44: #{tpu_custom_call.1} parent=39 // pred_fallthru
              _
            // Predicated region
            $region45: #{tpu_custom_call.1} parent=39 // pred_check
              _
            $region46: #{tpu_custom_call.1} parent=39 // pred_check_branch
              %270 = sbr.rel (0) target = $region48
            $region47: #{tpu_custom_call.1} parent=39 // pred_region
              %s272 = ssub.s32 16, 1
              loop: start=0, step=1, limit=1
              $region49: #{tpu_custom_call.1} parent=47 // loop_pre_header
                _
              $region50: #{tpu_custom_call.1} parent=47 // loop_header
                %s274 = sphi 0, %s278
                %p275 = scmp.ge.s32.totalorder %s274, 1
                %s279 = sphi %s264, %s264
                %s280 = sphi %s262, %s262
              $region51: #{tpu_custom_call.1} parent=47 // loop_header_branch
                %277 = sbr.rel (%p275) target = $region55
              $region52: #{tpu_custom_call.1} parent=47 // loop_body
                %v281 = vld [vmem:[%s279] sm:%s272]
                %282 = vst [vmem:[%s280] sm:%s272] %v281
                %v283 = vld [vmem:[%s279 + $0x8] sm:%s272]
                %284 = vst [vmem:[%s280 + $0x4] sm:%s272] %v283
                %v285 = vld [vmem:[%s279 + $0x10] sm:%s272]
                %286 = vst [vmem:[%s280 + $0x8] sm:%s272] %v285
                %v287 = vld [vmem:[%s279 + $0x18] sm:%s272]
                %288 = vst [vmem:[%s280 + $0xc] sm:%s272] %v287
              $region53: #{tpu_custom_call.1} parent=47 // loop_footer
                %s278 = sadd.s32 1, %s274
              $region54: #{tpu_custom_call.1} parent=47 // loop_footer_branch
                %273 = sbr.rel target = $region50
              $region55: #{tpu_custom_call.1} parent=47 // loop_exit
                _
            $region48: #{tpu_custom_call.1} parent=39 // pred_fallthru
              _
          $region40: #{tpu_custom_call.1} parent=35 // pred_fallthru
            _
          %317 = vnop
        $region36: #{tpu_custom_call.1} parent=27 // pred_fallthru
          _
        // Predicated region
        $region74: #{tpu_custom_call.1} parent=27 // pred_check
          %p318 = pneg %p142
        $region75: #{tpu_custom_call.1} parent=27 // pred_check_branch
          %320 = sbr.rel (%p318) target = $region77
        $region76: #{tpu_custom_call.1} parent=27 // pred_region
          %p321 = scmp.lt.s32.totalorder %s24, 1
          %s322 = scalar_select %p321, %s24, 1
          %s323 = scalar_lea.vmem %s4, %s322
        $region77: #{tpu_custom_call.1} parent=27 // pred_fallthru
          _
        // Predicated region
        $region78: #{tpu_custom_call.1} parent=27 // pred_check
          %p324 = pneg %p168
        $region79: #{tpu_custom_call.1} parent=27 // pred_check_branch
          %326 = sbr.rel (%p324) target = $region81
        $region80: #{tpu_custom_call.1} parent=27 // pred_region
          %s327 = smul.u32 16, %s24
          %p328 = scmp.lt.s32.totalorder %s327, 31
          %s329 = scalar_select %p328, %s327, 31
          %s330 = smul.addr %s329, 4
          %s331 = scalar_lea.vmem %s5, %s330
          %s332 = smul.u32 16, %s24
        $region81: #{tpu_custom_call.1} parent=27 // pred_fallthru
          _
      $region28: #{tpu_custom_call.1} parent=5 // pred_fallthru
        _
      %p333 = scmp.le.s32.totalorder 1, %s16
      %p334 = scmp.lt.s32.totalorder %s16, 5
      %p335 = pnand %p333, %p334
      %p336 = pneg %p335
      // Predicated region
      $region82: #{tpu_custom_call.1} parent=5 // pred_check
        _
      $region83: #{tpu_custom_call.1} parent=5 // pred_check_branch
        %338 = sbr.rel (%p335) target = $region85
      $region84: #{tpu_custom_call.1} parent=5 // pred_region
        %s339 = ssub.s32 %s16, 1
        %s340 = sand.u32 %s109, 1
        %s341 = sand.u32 %s109, 1
        %s342 = smul.addr %s341, 16
        %s343 = scalar_lea.vmem [#allocation4], %s342
        // Predicated region
        $region86: #{tpu_custom_call.1} parent=84 // pred_check
          %p344 = pneg %p122
        $region87: #{tpu_custom_call.1} parent=84 // pred_check_branch
          %346 = sbr.rel (%p344) target = $region89
        $region88: #{tpu_custom_call.1} parent=84 // pred_region
          _
        $region89: #{tpu_custom_call.1} parent=84 // pred_fallthru
          _
        %p347 = scmp.lt.s32.totalorder %s25, 1
        %s348 = scalar_select %p347, %s25, 1
        %s349 = smul.addr %s348, 8
        %s350 = scalar_lea.vmem %s0, %s349
        %p351 = pneg %p54
        %p352 = pneg %p51
        %p353 = pneg %p75
        %p354 = pneg %p72
        %p355 = pneg %p96
        %p356 = pneg %p93
        %s357 = sand.u32 %s109, 1
        %s358 = sand.u32 %s109, 1
        %s359 = smul.addr %s358, 16
        %s360 = scalar_lea.vmem [#allocation4], %s359
        %p361 = pneg %p122
        %p362 = pneg %p119
        %p363 = scmp.lt.s32.totalorder %s26, 1
        %s364 = scalar_select %p363, %s26, 1
        %s365 = scalar_lea.vmem %s4, %s364
        %p366 = pneg %p148
        %p367 = pneg %p145
        %s368 = smul.u32 16, %s26
        %p369 = scmp.lt.s32.totalorder %s368, 31
        %s370 = scalar_select %p369, %s368, 31
        %s371 = smul.addr %s370, 4
        %s372 = scalar_lea.vmem %s5, %s371
        %p373 = pneg %p174
        %p374 = pneg %p171
        %p375 = pneg %p195
        %p376 = pneg %p192
        %p377 = pneg %p221
        %p378 = pneg %p218
        %s379 = sand.u32 %s208, 1
        %s380 = scalar_lea.sflag [#allocation6], %s379
        %s381 = sand.u32 %s208, 1
        %s382 = smul.addr %s381, 8
        %s383 = scalar_lea.vmem [#allocation5], %s382
        %p384 = scmp.lt.s32.totalorder %s25, 1
        %s385 = scalar_select %p384, %s25, 1
        %s386 = smul.addr %s385, 8
        %s387 = scalar_lea.vmem %s0, %s386
        %p388 = scmp.lt.s32.totalorder %s26, 1
        %s389 = scalar_select %p388, %s26, 1
        %s390 = scalar_lea.vmem %s4, %s389
        %s391 = smul.u32 16, %s26
        %p392 = scmp.lt.s32.totalorder %s391, 31
        %s393 = scalar_select %p392, %s391, 31
        %s394 = smul.addr %s393, 4
        %s395 = scalar_lea.vmem %s5, %s394
        %s396 = smul.u32 16, %s26
        %p398 = scmp.eq.s32.totalorder %s26, 0
        // Predicated region
        $region90: #{tpu_custom_call.1} parent=84 // pred_check
          %p399 = pneg %p398
        $region91: #{tpu_custom_call.1} parent=84 // pred_check_branch
          %401 = sbr.rel (%p399) target = $region93
        $region92: #{tpu_custom_call.1} parent=84 // pred_region
          %v402 = vld [vmem:[%s387] sm:$0xff]
          %vm403 = vcmask 261120
          %v404 = vsel %vm403, %v402, 0.0
          %405 = vadd.xlane.f32.xlu0 %v404
          %v406 = vpop.xlane.xlu0 %405
          %v407 = vrcp.pop 32.0
          %v408 = vmul.f32 %v406, %v407
          %v409 = vsub.f32 %v402, %v408
          %v410 = vmul.f32 %v409, %v409
          %v411 = vsel %vm403, %v410, 0.0
          %412 = vadd.xlane.f32.xlu0 %v411
          %v413 = vpop.xlane.xlu0 %412
          %v414 = vmul.f32 %v413, %v407
          %v415 = vadd.f32 %v414, 1e-12
          %v416 = vrsqrt.pop %v415
          %v417 = vmul.f32 %v409, %v416
          %v418 = vld [vmem:[%s1] sm:$0x1]
          %v420 = vlaneseq
          %v421 = vshrl.u32 %v420, 7
          %v422 = vsub.s32 0, %v421
          %v423 = vrot.slane %v418, %v422
          %v425 = vmul.f32 %v417, %v423
          %v426 = vld [vmem:[%s2] sm:$0x1]
          %v428 = vlaneseq
          %v429 = vshrl.u32 %v428, 7
          %v430 = vsub.s32 0, %v429
          %v431 = vrot.slane %v426, %v430
          %v433 = vadd.f32 %v425, %v431
          %v434 = vpack.c.bf16 %v433, %v433
          %vm435 = vcmask 257024
          %436 = vst.msk [vmem:[#allocation2] sm:$0xf] %vm435, %v434
        $region93: #{tpu_custom_call.1} parent=84 // pred_fallthru
          _
        %v437 = vld [vmem:[#allocation2] sm:$0xf]
        %v438 = vld [vmem:[%s343] sm:$0xf]
        %v439 = vld [vmem:[%s343 + $0x4] sm:$0xf]
        %v440 = vld [vmem:[%s343 + $0x8] sm:$0xf]
        %v441 = vld [vmem:[%s343 + $0xc] sm:$0xf]
        %v442 = vld [vmem:[%s390] sm:$0x1]
        %v444 = vlaneseq
        %v445 = vshrl.u32 %v444, 7
        %v446 = vsub.s32 0, %v445
        %v447 = vrot.slane %v442, %v446
        %v453 = vunpack.c.l.b16 %v438
        %v454 = vunpack.c.l.b16 %v439
        %v455 = vunpack.c.l.b16 %v440
        %v456 = vunpack.c.l.b16 %v441
        %v457 = vpack.c.b16 %v454, %v453
        %v458 = vpack.c.b16 %v456, %v455
        %vm461 = vcmask 261120
        %v463 = vsel %vm461, %v437, 0
        %465 = vmatprep.subr.bf16.mxu0 0
        %466 = vmatpush1.bf16.msra.mxu0 0
        %467 = vmatprep.subr.bf16.mxu0 0
        %468 = vmatpush1.bf16.msra.mxu0 0
        %469 = vmatprep.subr.bf16.mxu0 0
        %470 = vmatpush1.bf16.msra.mxu0 0
        %471 = vmatprep.subr.bf16.mxu0 0
        %472 = vmatpush1.bf16.msra.mxu0 0
        %473 = vmatprep.subr.bf16.mxu0 0
        %474 = vmatpush1.bf16.msra.mxu0 0
        %475 = vmatprep.subr.bf16.mxu0 0
        %476 = vmatpush1.bf16.msra.mxu0 0
        %477 = vmatprep.subr.bf16.mxu0 0
        %478 = vmatpush1.bf16.msra.mxu0 %v458
        %479 = vmatprep.subr.bf16.mxu0 0
        %480 = vmatpush1.bf16.msra.mxu0 %v457
        %481 = vmatprep.subr.bf16.mxu0 0
        %482 = vmatpush2.bf16.msra.mxu0 0
        %483 = vmatprep.subr.bf16.mxu0 0
        %484 = vmatpush2.bf16.msra.mxu0 0
        %485 = vmatprep.subr.bf16.mxu0 0
        %486 = vmatpush2.bf16.msra.mxu0 0
        %487 = vmatprep.subr.bf16.mxu0 0
        %488 = vmatpush2.bf16.msra.mxu0 0
        %489 = vmatprep.subr.bf16.mxu0 0
        %490 = vmatpush2.bf16.msra.mxu0 0
        %491 = vmatprep.subr.bf16.mxu0 0
        %492 = vmatpush2.bf16.msra.mxu0 0
        %493 = vmatprep.subr.bf16.mxu0 0
        %494 = vmatpush2.bf16.msra.mxu0 0
        %495 = vmatprep.subr.bf16.mxu0 0
        %496 = vmatpush2.bf16.msra.mxu0 0
        %497 = vmatprep.mubr.bf16.mxu0 0
        %498 = vmatmul.mubr.bf16.gmra.mxu0 %v463
        %v499 = vpop.f32.mrf.mxu0
        %v500 = vadd.f32 %v447, %v499
        %v501 = vpop.f32.mrf.mxu0
        %v502 = vpop.f32.mrf.mxu0
        %v503 = vpop.f32.mrf.mxu0
        %504 = vdwg.mxu0
        %v505 = vmul.f32 %v500, 0.5
        %v506 = vmul.f32 %v500, 0.044715
        %v507 = vmul.f32 %v506, %v500
        %v508 = vmul.f32 %v507, %v500
        %v509 = vadd.f32 %v500, %v508
        %v510 = vmul.f32 %v509, 0.7978846
        %v511 = vtanh.pop %v510
        %v512 = vadd.f32 %v511, 1.0
        %v513 = vmul.f32 %v505, %v512
        %v514 = vpack.c.bf16 %v513, %v513
        %v515 = vld [vmem:[%s395] sm:$0xf]
        %v516 = vld [vmem:[%s395 + $0x4] sm:$0xf]
        %v517 = vld [vmem:[%s395 + $0x8] sm:$0xf]
        %v518 = vld [vmem:[%s395 + $0xc] sm:$0xf]
        %v519 = vld [vmem:[%s395 + $0x10] sm:$0xf]
        %v520 = vld [vmem:[%s395 + $0x14] sm:$0xf]
        %v521 = vld [vmem:[%s395 + $0x18] sm:$0xf]
        %v522 = vld [vmem:[%s395 + $0x1c] sm:$0xf]
        %v523 = vld [vmem:[%s395 + $0x20] sm:$0xf]
        %v524 = vld [vmem:[%s395 + $0x24] sm:$0xf]
        %v525 = vld [vmem:[%s395 + $0x28] sm:$0xf]
        %v526 = vld [vmem:[%s395 + $0x2c] sm:$0xf]
        %v527 = vld [vmem:[%s395 + $0x30] sm:$0xf]
        %v528 = vld [vmem:[%s395 + $0x34] sm:$0xf]
        %v529 = vld [vmem:[%s395 + $0x38] sm:$0xf]
        %v530 = vld [vmem:[%s395 + $0x3c] sm:$0xf]
        %v547 = vunpack.c.l.b16 %v515
        %v548 = vunpack.c.l.b16 %v516
        %v549 = vunpack.c.l.b16 %v517
        %v550 = vunpack.c.l.b16 %v518
        %v551 = vunpack.c.l.b16 %v519
        %v552 = vunpack.c.l.b16 %v520
        %v553 = vunpack.c.l.b16 %v521
        %v554 = vunpack.c.l.b16 %v522
        %v555 = vunpack.c.l.b16 %v523
        %v556 = vunpack.c.l.b16 %v524
        %v557 = vunpack.c.l.b16 %v525
        %v558 = vunpack.c.l.b16 %v526
        %v559 = vunpack.c.l.b16 %v527
        %v560 = vunpack.c.l.b16 %v528
        %v561 = vunpack.c.l.b16 %v529
        %v562 = vunpack.c.l.b16 %v530
        %v563 = vpack.c.b16 %v548, %v547
        %v564 = vpack.c.b16 %v550, %v549
        %v565 = vpack.c.b16 %v552, %v551
        %v566 = vpack.c.b16 %v554, %v553
        %v567 = vpack.c.b16 %v556, %v555
        %v568 = vpack.c.b16 %v558, %v557
        %v569 = vpack.c.b16 %v560, %v559
        %v570 = vpack.c.b16 %v562, %v561
        %579 = vmatprep.subr.bf16.mxu0 0
        %580 = vmatpush1.bf16.msra.mxu0 %v570
        %581 = vmatprep.subr.bf16.mxu0 0
        %582 = vmatpush1.bf16.msra.mxu0 %v569
        %583 = vmatprep.subr.bf16.mxu0 0
        %584 = vmatpush1.bf16.msra.mxu0 %v568
        %585 = vmatprep.subr.bf16.mxu0 0
        %586 = vmatpush1.bf16.msra.mxu0 %v567
        %587 = vmatprep.subr.bf16.mxu0 0
        %588 = vmatpush1.bf16.msra.mxu0 %v566
        %589 = vmatprep.subr.bf16.mxu0 0
        %590 = vmatpush1.bf16.msra.mxu0 %v565
        %591 = vmatprep.subr.bf16.mxu0 0
        %592 = vmatpush1.bf16.msra.mxu0 %v564
        %593 = vmatprep.subr.bf16.mxu0 0
        %594 = vmatpush1.bf16.msra.mxu0 %v563
        %595 = vmatprep.subr.bf16.mxu0 0
        %596 = vmatpush2.bf16.msra.mxu0 0
        %597 = vmatprep.subr.bf16.mxu0 0
        %598 = vmatpush2.bf16.msra.mxu0 0
        %599 = vmatprep.subr.bf16.mxu0 0
        %600 = vmatpush2.bf16.msra.mxu0 0
        %601 = vmatprep.subr.bf16.mxu0 0
        %602 = vmatpush2.bf16.msra.mxu0 0
        %603 = vmatprep.subr.bf16.mxu0 0
        %604 = vmatpush2.bf16.msra.mxu0 0
        %605 = vmatprep.subr.bf16.mxu0 0
        %606 = vmatpush2.bf16.msra.mxu0 0
        %607 = vmatprep.subr.bf16.mxu0 0
        %608 = vmatpush2.bf16.msra.mxu0 0
        %609 = vmatprep.subr.bf16.mxu0 0
        %610 = vmatpush2.bf16.msra.mxu0 0
        %611 = vmatprep.mubr.bf16.mxu0 0
        %612 = vmatmul.mubr.bf16.gmra.mxu0 %v514
        %v613 = vpop.f32.mrf.mxu0
        %v614 = vadd.f32 0.0, %v613
        %v615 = vpop.f32.mrf.mxu0
        %v616 = vpop.f32.mrf.mxu0
        %v617 = vpop.f32.mrf.mxu0
        %618 = vdwg.mxu0
        // Predicated region
        $region94: #{tpu_custom_call.1} parent=84 // pred_check
          %p619 = pneg %p398
        $region95: #{tpu_custom_call.1} parent=84 // pred_check_branch
          %621 = sbr.rel (%p619) target = $region97
        $region96: #{tpu_custom_call.1} parent=84 // pred_region
          %622 = vst.msk [vmem:[#allocation3] sm:$0xff] %vm461, %v614
        $region97: #{tpu_custom_call.1} parent=84 // pred_fallthru
          _
        %p623 = scmp.ne.s32.totalorder %s26, 0
        // Predicated region
        $region98: #{tpu_custom_call.1} parent=84 // pred_check
          %p624 = pneg %p623
        $region99: #{tpu_custom_call.1} parent=84 // pred_check_branch
          %626 = sbr.rel (%p624) target = $region101
        $region100: #{tpu_custom_call.1} parent=84 // pred_region
          %v627 = vld [vmem:[#allocation3] sm:$0xff]
          %v628 = vadd.f32 %v627, %v614
          %629 = vst.msk [vmem:[#allocation3] sm:$0xff] %vm461, %v628
        $region101: #{tpu_custom_call.1} parent=84 // pred_fallthru
          _
        %p630 = scmp.eq.s32.totalorder %s26, 1
        // Predicated region
        $region102: #{tpu_custom_call.1} parent=84 // pred_check
          %p631 = pneg %p630
        $region103: #{tpu_custom_call.1} parent=84 // pred_check_branch
          %633 = sbr.rel (%p631) target = $region105
        $region104: #{tpu_custom_call.1} parent=84 // pred_region
          %v634 = vld [vmem:[#allocation3] sm:$0xff]
          %v635 = vld [vmem:[%s6] sm:$0x1]
          %v637 = vlaneseq
          %v638 = vshrl.u32 %v637, 7
          %v639 = vsub.s32 0, %v638
          %v640 = vrot.slane %v635, %v639
          %v642 = vadd.f32 %v634, %v640
          %v643 = vld [vmem:[%s387] sm:$0xff]
          %v644 = vadd.f32 %v642, %v643
          %645 = vst.msk [vmem:[%s383] sm:$0xff] %vm461, %v644
        $region105: #{tpu_custom_call.1} parent=84 // pred_fallthru
          _
        %s646 = sand.u32 %s208, 1
        %s647 = scalar_lea.sflag [#allocation6], %s646
        %s648 = sand.u32 %s208, 1
        %s649 = smul.addr %s648, 8
        %s650 = scalar_lea.vmem [#allocation5], %s649
        // Predicated region
        $region106: #{tpu_custom_call.1} parent=84 // pred_check
          %p651 = pneg %p218
        $region107: #{tpu_custom_call.1} parent=84 // pred_check_branch
          %653 = sbr.rel (%p651) target = $region109
        $region108: #{tpu_custom_call.1} parent=84 // pred_region
          %s655 = ssub.s32 128, 128
          %656 = vsyncadd %s647, %s655
          %s657 = smul.addr %s25, 128
          %s658 = scalar_lea.hbm %s7, %s657
          %s660 = sshll.u32 %s650, 4
          %s661 = int_to_ptr.vmem [resolvable:$true] %s660
          %663 = dma.vmem_to_hbm [thread:$0]  %s661, 128, %s658, %s647
        $region109: #{tpu_custom_call.1} parent=84 // pred_fallthru
          _
      $region85: #{tpu_custom_call.1} parent=5 // pred_fallthru
        _
      %p664 = scmp.le.s32.totalorder 2, %s16
      // Predicated region
      $region110: #{tpu_custom_call.1} parent=5 // pred_check
        %p665 = pneg %p664
      $region111: #{tpu_custom_call.1} parent=5 // pred_check_branch
        %667 = sbr.rel (%p665) target = $region113
      $region112: #{tpu_custom_call.1} parent=5 // pred_region
        %s668 = ssub.s32 %s16, 2
        // Predicated region
        $region114: #{tpu_custom_call.1} parent=112 // pred_check
          %p669 = pneg %p224
        $region115: #{tpu_custom_call.1} parent=112 // pred_check_branch
          %671 = sbr.rel (%p669) target = $region117
        $region116: #{tpu_custom_call.1} parent=112 // pred_region
          %s672 = sand.u32 %s209, 1
          %s673 = scalar_lea.sflag [#allocation6], %s672
          %s674 = sand.u32 %s209, 1
          %s675 = smul.addr %s674, 8
          %s676 = scalar_lea.vmem [#allocation5], %s675
          %677 = dma.done %s673, 128
        $region117: #{tpu_custom_call.1} parent=112 // pred_fallthru
          _
      $region113: #{tpu_custom_call.1} parent=5 // pred_fallthru
        _
    $region6: #{tpu_custom_call.1} parent=1 // loop_footer
      %s20 = sadd.s32 1, %s16
    $region7: #{tpu_custom_call.1} parent=1 // loop_footer_branch
      %15 = sbr.rel target = $region3
    $region8: #{tpu_custom_call.1} parent=1 // loop_exit
      _
    %678 = vsyncpa [#allocation6], 1
    %s679 = scalar_lea.sflag [#allocation6], 1
    %680 = vsyncpa %s679, 1

</llo_original>
